<compile_context>
chip_gen: v6e
topology: v6e:2x2x1
jax: 0.10.0
libtpu: 0.0.40
codegen_flags: <defaults>
</compile_context>

<pallas_src>
import math

import jax
import jax.numpy as jnp
from jax.experimental import pallas as pl
from jax.experimental.pallas import tpu as pltpu


# ----------------------------------------------------------------------------
# Buffer construction (mirrors PositionalEncoding.__init__)
# ----------------------------------------------------------------------------
def make_positional_encoding_table(d_model, max_len=5000, dtype=jnp.float32):
    pos = jnp.arange(max_len, dtype=jnp.float32)[:, None]               # (L, 1)
    div = jnp.exp(jnp.arange(0, d_model, 2, dtype=jnp.float32)
                  * (-math.log(10000.0) / d_model))                     # (ceil(D/2),)
    ang = pos * div                                                     # (L, ceil(D/2))
    pe = jnp.zeros((max_len, d_model), jnp.float32)
    pe = pe.at[:, 0::2].set(jnp.sin(ang))
    pe = pe.at[:, 1::2].set(jnp.cos(ang[:, : d_model // 2]))            # odd-D safe
    return pe.astype(dtype)


# ----------------------------------------------------------------------------
# Tile selection: dtype-aware sublane multiple, VMEM budget, >=2 seq steps.
# ----------------------------------------------------------------------------
def _pick_tiles(B, S, D, x_itemsize, pe_itemsize):
    sub = max(8, 32 // x_itemsize)            # sublane packing multiple (8/16/32)
    # Budget for the per-step working set: stays comfortably inside every
    # generation's default scoped-VMEM limit (16 MiB on v5e) with headroom.
    budget = 12 * 1024 * 1024

    def vmem_bytes(bB, tS):
        xo = 2 * 2 * bB * tS * D * x_itemsize   # x + out blocks, double-buffered
        pe = 2 * tS * D * pe_itemsize           # pe block, double-buffered
        return xo + pe

    bB = B
    # Largest power-of-two seq tile (cap 2048) that is a sublane multiple,
    # leaves >= 2 grid steps along seq (megacore), and fits the VMEM budget.
    tS = None
    t = 2048
    while t >= sub:
        if t % sub == 0 and t < S and vmem_bytes(bB, t) <= budget:
            tS = t
            break
        t //= 2
    if tS is None:
        # Sequence too short to split (or budget too tight): take it whole
        # (full-dim block is always layout-legal), else fall back to `sub`.
        tS = S if vmem_bytes(bB, S) <= budget else sub
    # If the batch-folded block still blows the budget, tile the batch too.
    while bB > 1 and vmem_bytes(bB, tS) > budget:
        bB = (bB + 1) // 2
    return bB, tS


# ----------------------------------------------------------------------------
# Pallas kernel: out = x + pe   (pe broadcast over batch, cast on the VPU)
# ----------------------------------------------------------------------------
def _add_pe_kernel(x_ref, pe_ref, o_ref):
    # x_ref / o_ref: (bB, tS, D) ; pe_ref: (tS, D) in the table's dtype.
    o_ref[...] = x_ref[...] + pe_ref[...].astype(x_ref.dtype)[None]


def positional_encoding_forward(x, pe_buffer):
    """x: (B, S, D) ; pe_buffer: (max_len, D) with max_len >= S."""
    B, S, D = x.shape
    max_len, D_pe = pe_buffer.shape
    assert D_pe == D, f"pe table d_model {D_pe} != input d_model {D}"
    assert S <= max_len, f"sequence length {S} exceeds max_len {max_len}"

    bB, tS = _pick_tiles(B, S, D,
                         jnp.dtype(x.dtype).itemsize,
                         jnp.dtype(pe_buffer.dtype).itemsize)

    grid = (pl.cdiv(S, tS), pl.cdiv(B, bB))   # batch innermost: pe block index
                                              # unchanged across b -> DMA skipped
    return pl.pallas_call(
        _add_pe_kernel,
        out_shape=jax.ShapeDtypeStruct((B, S, D), x.dtype),
        grid_spec=pltpu.PrefetchScalarGridSpec(
            num_scalar_prefetch=0,
            grid=grid,
            in_specs=[
                pl.BlockSpec((bB, tS, D), lambda s, b: (b, s, 0)),
                pl.BlockSpec((tS, D), lambda s, b: (s, 0)),
            ],
            out_specs=pl.BlockSpec((bB, tS, D), lambda s, b: (b, s, 0)),
        ),
        compiler_params=pltpu.CompilerParams(
            dimension_semantics=("parallel", "parallel")),
    )(x, pe_buffer)


if __name__ == "__main__":
    key = jax.random.PRNGKey(0)
    B, S, D, MAX_LEN = 2, 64, 128, 5000

    x = jax.random.normal(key, (B, S, D), jnp.float32)
    pe = make_positional_encoding_table(D, MAX_LEN)

    fwd = jax.jit(positional_encoding_forward)
    out = jax.block_until_ready(fwd(x, pe))

    # Reference: exactly the PyTorch forward, x + pe[:, :x.size(1)]
    ref = x + pe[None, :S, :]
    assert out.shape == (B, S, D), out.shape
    assert bool(jnp.all(jnp.isfinite(out)))
    assert bool(jnp.allclose(out, ref, atol=1e-6, rtol=1e-6))

    # Ragged seq length (no wrapper pad/slice path): boundary handled by Pallas.
    S2 = 72
    x2 = jax.random.normal(jax.random.PRNGKey(1), (B, S2, D), jnp.float32)
    out2 = jax.block_until_ready(jax.jit(positional_encoding_forward)(x2, pe))
    ref2 = x2 + pe[None, :S2, :]
    assert bool(jnp.allclose(out2, ref2, atol=1e-6, rtol=1e-6))

    print("KERNEL_OK")
</pallas_src>

<mosaic_0001>
module attributes {stable_mosaic.version = 11 : i64} {
  func.func @_add_pe_kernel(%arg0: i32, %arg1: i32, %arg2: memref<2x32x128xf32, #tpu.memory_space<vmem>>, %arg3: memref<32x128xf32, #tpu.memory_space<vmem>>, %arg4: memref<2x32x128xf32, #tpu.memory_space<vmem>>) attributes {dimension_semantics = [#tpu.dimension_semantics<parallel>, #tpu.dimension_semantics<parallel>], iteration_bounds = array<i64: 2, 1>, scalar_prefetch = 0 : i64, scratch_operands = 0 : i64, tpu.core_type = #tpu.core_type<tc>, window_params = [{transform_indices = @transform_0, window_bounds = array<i64: 2, 32, 128>}, {transform_indices = @transform_1, window_bounds = array<i64: 32, 128>}, {transform_indices = @transform_2, window_bounds = array<i64: 2, 32, 128>}]} {
    %c0 = arith.constant 0 : index
    %c0_0 = arith.constant 0 : index
    %c0_1 = arith.constant 0 : index
    %0 = vector.load %arg2[%c0, %c0_0, %c0_1] : memref<2x32x128xf32, #tpu.memory_space<vmem>>, vector<2x32x128xf32>
    %c0_2 = arith.constant 0 : index
    %c0_3 = arith.constant 0 : index
    %1 = vector.load %arg3[%c0_2, %c0_3] : memref<32x128xf32, #tpu.memory_space<vmem>>, vector<32x128xf32>
    %2 = vector.shape_cast %1 : vector<32x128xf32> to vector<1x32x128xf32>
    %3 = vector.broadcast %2 : vector<1x32x128xf32> to vector<2x32x128xf32>
    %4 = arith.addf %0, %3 : vector<2x32x128xf32>
    %c0_4 = arith.constant 0 : index
    %c0_5 = arith.constant 0 : index
    %c0_6 = arith.constant 0 : index
    %5 = vector.load %arg4[%c0_4, %c0_5, %c0_6] : memref<2x32x128xf32, #tpu.memory_space<vmem>>, vector<2x32x128xf32>
    tpu.vector_store %arg4[%c0_4, %c0_5, %c0_6], %4 {strides = array<i32>} : memref<2x32x128xf32, #tpu.memory_space<vmem>>, vector<2x32x128xf32>,
    return
  }
  func.func @transform_0(%arg0: i32, %arg1: i32) -> (i32, i32, i32) {
    %c0_i32 = arith.constant 0 : i32
    %c0_i32_0 = arith.constant 0 : i32
    return %arg1, %arg0, %c0_i32 : i32, i32, i32
  }
  func.func @transform_1(%arg0: i32, %arg1: i32) -> (i32, i32) {
    %c0_i32 = arith.constant 0 : i32
    %c0_i32_0 = arith.constant 0 : i32
    return %arg0, %c0_i32 : i32, i32
  }
  func.func @transform_2(%arg0: i32, %arg1: i32) -> (i32, i32, i32) {
    %c0_i32 = arith.constant 0 : i32
    %c0_i32_0 = arith.constant 0 : i32
    return %arg1, %arg0, %c0_i32 : i32, i32, i32
  }
}

</mosaic_0001>

<llo_original>
// kernel: positional_encoding_forward.1
$region0: #{positional_encoding_forward.1}
  #allocation0 [shape = 'u32[]', space=smem, size = 0x4, offset = 0x4, fixed_abs, tag = 'smem constant byte address 0x4 - core index']
  #allocation1 [shape = 'u32[144,128]{1,0:T(1,128)}', space=vmem, size = 0x12000, scoped, tag = 'internal scratch']
  #allocation8 [shape = 's32[]', space=sflag, size = 0x4, offset = 0, fixed_abs, tag = 'sflag constant byte address 0x0 - dummy sync flag']
  #allocation10 [shape = 's32[]', space=sflag, size = 0x4, offset = 0, fixed_abs, tag = 'sflag constant byte address 0x0 - dummy sync flag']
  %s0 = inlined_call_operand.hbm [shape: f32[2,64,128], index: 0, kind: input, shape index: {}]
  %s1 = inlined_call_operand.hbm [shape: f32[5000,128], index: 1, kind: input, shape index: {}]
  %s2 = inlined_call_operand.hbm [shape: f32[2,64,128], index: 2, kind: output, shape index: {}]
  %s3 = sld [smem:[#allocation0]]
  $region49: #{positional_encoding_forward.1} parent=0
    _
  %s5 = ssub.s32 1, %s3
  %s6 = scalar_select 0, %s5, %s3
  $region1: #{positional_encoding_forward.1} parent=0
    #allocation2 [shape = 'u8[65536]{0}', space=vmem, size = 0x10000, scoped, tag = 'input window, operand 0']
    #allocation3 [shape = 's32[2]{0}', space=sflag, size = 0x8, scoped, tag = 'scoped memory for positional_encoding_forward.1']
    #allocation4 [shape = 's32[2]{0}', space=sflag, size = 0x8, scoped, tag = 'scoped memory for positional_encoding_forward.1']
    #allocation5 [shape = 'u8[32768]{0}', space=vmem, size = 0x8000, scoped, tag = 'input window, operand 1']
    #allocation6 [shape = 's32[2]{0}', space=sflag, size = 0x8, scoped, tag = 'scoped memory for positional_encoding_forward.1']
    #allocation7 [shape = 'u8[65536]{0}', space=vmem, size = 0x10000, scoped, tag = 'output window, operand 0']
    %7 = vsyncpa [#allocation3], 0
    %s8 = scalar_lea.sflag [#allocation3], 1
    %9 = vsyncpa %s8, 0
    %10 = vsyncpa [#allocation6], 0
    %s11 = scalar_lea.sflag [#allocation6], 1
    %12 = vsyncpa %s11, 0
    %13 = vsyncpa [#allocation4], 0
    %s14 = scalar_lea.sflag [#allocation4], 1
    %15 = vsyncpa %s14, 0
    loop: start=0, step=1, limit=4
    $region2: #{positional_encoding_forward.1} parent=1 // loop_pre_header
      _
    $region3: #{positional_encoding_forward.1} parent=1 // loop_header
      %s17 = sphi 0, %s21
      %p18 = scmp.ge.s32.totalorder %s17, 4
      %s24 = sphi 0, %s36
      %s25 = sphi 0, %s32
      %s26 = sphi 0, %s24
      %s27 = sphi 0, %s25
      %s28 = sphi 0, %s26
      %s29 = sphi 0, %s27
      %s41 = sphi 0, %s43
      %s44 = sphi 0, %s41
      %s45 = sphi 0, %s44
      %s61 = sphi 0, %s45
      %s67 = sphi 0, %s69
      %s70 = sphi 0, %s67
      %s71 = sphi 0, %s70
      %s87 = sphi 0, %s71
      %s95 = sphi 0, %s97
      %s98 = sphi 0, %s95
      %s99 = sphi 0, %s98
      %s115 = sphi 0, %s99
    $region4: #{positional_encoding_forward.1} parent=1 // loop_header_branch
      %20 = sbr.rel (%p18) target = $region8
    $region5: #{positional_encoding_forward.1} parent=1 // loop_body
      %s22 = ssub.s32 %s17, 1
      %s23 = ssub.s32 %s17, 2
      %s30 = sadd.s32 1, %s25
      %p31 = scmp.ge.s32.totalorder %s30, 1
      %s32 = scalar_select %p31, 0, %s30
      %s33 = sadd.s32 1, %s24
      %s34 = scalar_select %p31, %s33, %s24
      %p35 = scmp.ge.s32.totalorder %s34, 2
      %s36 = scalar_select %p35, 0, %s34
      %s37 = ssub.s32 %s25, %s32
      %s38 = ssub.s32 %s24, %s36
      %s39 = sor.u32 %s37, %s38
      %p40 = scmp.eq.s32.totalorder %s39, 0
      %s42 = sadd.s32 %s41, 1
      %s43 = scalar_select %p40, %s41, %s42
      %p46 = pneg %p40
      %p47 = scmp.eq.s32.totalorder %s17, 1
      %p48 = por %p46, %p47
      %p49 = scmp.ne.s32.totalorder %s41, %s44
      %p50 = scmp.eq.s32.totalorder %s17, 0
      %p51 = por %p49, %p50
      %p52 = scmp.ne.s32.totalorder %s41, %s44
      %p53 = scmp.eq.s32.totalorder %s22, 1
      %p54 = por %p52, %p53
      %p55 = scmp.ne.s32.totalorder %s44, %s45
      %p56 = scmp.eq.s32.totalorder %s22, 0
      %p57 = por %p55, %p56
      %p58 = scmp.ne.s32.totalorder %s44, %s45
      %p59 = scmp.eq.s32.totalorder %s23, 1
      %p60 = por %p58, %p59
      %p62 = scmp.ne.s32.totalorder %s45, %s61
      %p63 = scmp.eq.s32.totalorder %s23, 0
      %p64 = por %p62, %p63
      %s65 = ssub.s32 %s24, %s36
      %p66 = scmp.eq.s32.totalorder %s65, 0
      %s68 = sadd.s32 %s67, 1
      %s69 = scalar_select %p66, %s67, %s68
      %p72 = pneg %p66
      %p73 = scmp.eq.s32.totalorder %s17, 1
      %p74 = por %p72, %p73
      %p75 = scmp.ne.s32.totalorder %s67, %s70
      %p76 = scmp.eq.s32.totalorder %s17, 0
      %p77 = por %p75, %p76
      %p78 = scmp.ne.s32.totalorder %s67, %s70
      %p79 = scmp.eq.s32.totalorder %s22, 1
      %p80 = por %p78, %p79
      %p81 = scmp.ne.s32.totalorder %s70, %s71
      %p82 = scmp.eq.s32.totalorder %s22, 0
      %p83 = por %p81, %p82
      %p84 = scmp.ne.s32.totalorder %s70, %s71
      %p85 = scmp.eq.s32.totalorder %s23, 1
      %p86 = por %p84, %p85
      %p88 = scmp.ne.s32.totalorder %s71, %s87
      %p89 = scmp.eq.s32.totalorder %s23, 0
      %p90 = por %p88, %p89
      %s91 = ssub.s32 %s25, %s32
      %s92 = ssub.s32 %s24, %s36
      %s93 = sor.u32 %s91, %s92
      %p94 = scmp.eq.s32.totalorder %s93, 0
      %s96 = sadd.s32 %s95, 1
      %s97 = scalar_select %p94, %s95, %s96
      %p100 = pneg %p94
      %p101 = scmp.eq.s32.totalorder %s17, 1
      %p102 = por %p100, %p101
      %p103 = scmp.ne.s32.totalorder %s95, %s98
      %p104 = scmp.eq.s32.totalorder %s17, 0
      %p105 = por %p103, %p104
      %p106 = scmp.ne.s32.totalorder %s95, %s98
      %p107 = scmp.eq.s32.totalorder %s22, 1
      %p108 = por %p106, %p107
      %p109 = scmp.ne.s32.totalorder %s98, %s99
      %p110 = scmp.eq.s32.totalorder %s22, 0
      %p111 = por %p109, %p110
      %p112 = scmp.ne.s32.totalorder %s98, %s99
      %p113 = scmp.eq.s32.totalorder %s23, 1
      %p114 = por %p112, %p113
      %p116 = scmp.ne.s32.totalorder %s99, %s115
      %p117 = scmp.eq.s32.totalorder %s23, 0
      %p118 = por %p116, %p117
      %p119 = scmp.le.s32.totalorder 1, %s17
      %p120 = scmp.lt.s32.totalorder %s17, 3
      %p121 = pnand %p119, %p120
      %p122 = pneg %p121
      // Predicated region
      $region9: #{positional_encoding_forward.1} parent=5 // pred_check
        _
      $region10: #{positional_encoding_forward.1} parent=5 // pred_check_branch
        %124 = sbr.rel (%p121) target = $region12
      $region11: #{positional_encoding_forward.1} parent=5 // pred_region
        %s125 = ssub.s32 %s17, 1
      $region12: #{positional_encoding_forward.1} parent=5 // pred_fallthru
        _
      %p126 = scmp.lt.s32.totalorder %s17, 2
      // Predicated region
      $region13: #{positional_encoding_forward.1} parent=5 // pred_check
        %p127 = pneg %p126
      $region14: #{positional_encoding_forward.1} parent=5 // pred_check_branch
        %129 = sbr.rel (%p127) target = $region16
      $region15: #{positional_encoding_forward.1} parent=5 // pred_region
        // Predicated region
        $region17: #{positional_encoding_forward.1} parent=15 // pred_check
          %p130 = pneg %p51
        $region18: #{positional_encoding_forward.1} parent=15 // pred_check_branch
          %132 = sbr.rel (%p130) target = $region20
        $region19: #{positional_encoding_forward.1} parent=15 // pred_region
          #allocation9 [shape = 'u32[6]{0}', space=smem, size = 0x18, scoped, tag = 'DMA stride descriptor']
          %s133 = sand.u32 %s41, 1
          %s134 = scalar_lea.sflag [#allocation3], %s133
          %s135 = sand.u32 %s41, 1
          %s136 = smul.addr %s135, 64
          %s137 = scalar_lea.vmem [#allocation2], %s136
          %s138 = smul.u32 2, %s25
          %s139 = smul.u32 4, %s24
          %s141 = ssub.s32 1024, 1024
          %142 = vsyncadd %s134, %s141
          %s143 = smul.addr %s138, 8
          %s144 = sadd.s32 %s139, %s143
          %s145 = smul.addr %s144, 128
          %s146 = scalar_lea.hbm %s0, %s145
          %s148 = sshll.u32 1, 14
          %s149 = sxor.u32 4294967295, %s148
          %s151 = sld [smem:[#allocation0]]
          %s152 = sadd.s32 2, %s151
          %s154 = sshll.u32 7, 26
          %s155 = sxor.u32 4294967295, %s154
          %s156 = sand.u32 0, %s155
          %s157 = sshll.u32 %s152, 26
          %s158 = sor.u32 %s156, %s157
          %s159 = sshll.u32 %s137, 4
          %s160 = int_to_ptr.vmem [resolvable:$true] %s159
          %166 = sst [smem:[#allocation9]] 1024
          %s167 = scalar_lea.smem [#allocation9], 1
          %168 = sst [smem:[%s167]] 512
          %s169 = scalar_lea.smem [#allocation9], 2
          %170 = sst [smem:[%s169]] 4
          %s171 = scalar_lea.smem [#allocation9], 3
          %172 = sst [smem:[%s171]] 128
          %s173 = scalar_lea.smem [#allocation9], 4
          %174 = sst [smem:[%s173]] 128
          %s175 = scalar_lea.smem [#allocation9], 5
          %176 = sst [smem:[%s175]] 8
          %178 = dma.general %s146, 1024, %s160, %s134, 131072, [#allocation9], %s158, 0
        $region20: #{positional_encoding_forward.1} parent=15 // pred_fallthru
          _
        // Predicated region
        $region21: #{positional_encoding_forward.1} parent=15 // pred_check
          %p179 = pneg %p77
        $region22: #{positional_encoding_forward.1} parent=15 // pred_check_branch
          %181 = sbr.rel (%p179) target = $region24
        $region23: #{positional_encoding_forward.1} parent=15 // pred_region
          %s182 = sand.u32 %s67, 1
          %s183 = scalar_lea.sflag [#allocation6], %s182
          %s184 = sand.u32 %s67, 1
          %s185 = smul.addr %s184, 32
          %s186 = scalar_lea.vmem [#allocation5], %s185
          %s187 = smul.u32 4, %s24
          %s188 = ssub.s32 625, %s187
          %p189 = scmp.lt.s32.totalorder %s188, 4
          %s190 = scalar_select %p189, %s188, 4
          %s191 = smul.u32 128, %s190
          %s193 = ssub.s32 512, %s191
          %194 = vsyncadd %s183, %s193
          %p195 = scmp.ne.s32.totalorder 0, %s191
          %s196 = smul.addr %s187, 128
          %s197 = scalar_lea.hbm %s1, %s196
          %s198 = smul.u32 8, %s190
          %s199 = sshll.u32 %s186, 4
          %s200 = int_to_ptr.vmem [resolvable:$true] %s199
          %s201 = sshll.u32 %s198, 4
          %205 = dma.hbm_to_vmem [thread:$0]  (%p195), %s197, %s201, %s200, %s183, 128, 128, 8
        $region24: #{positional_encoding_forward.1} parent=15 // pred_fallthru
          _
      $region16: #{positional_encoding_forward.1} parent=5 // pred_fallthru
        _
      %p206 = scmp.le.s32.totalorder 1, %s17
      %p207 = scmp.lt.s32.totalorder %s17, 3
      %p208 = pnand %p206, %p207
      %p209 = pneg %p208
      // Predicated region
      $region25: #{positional_encoding_forward.1} parent=5 // pred_check
        _
      $region26: #{positional_encoding_forward.1} parent=5 // pred_check_branch
        %211 = sbr.rel (%p208) target = $region28
      $region27: #{positional_encoding_forward.1} parent=5 // pred_region
        %s212 = ssub.s32 %s17, 1
        %s213 = sand.u32 %s44, 1
        %s214 = scalar_lea.sflag [#allocation3], %s213
        %s215 = sand.u32 %s44, 1
        %s216 = smul.addr %s215, 64
        %s217 = scalar_lea.vmem [#allocation2], %s216
        // Predicated region
        $region29: #{positional_encoding_forward.1} parent=27 // pred_check
          %p218 = pneg %p57
        $region30: #{positional_encoding_forward.1} parent=27 // pred_check_branch
          %220 = sbr.rel (%p218) target = $region32
        $region31: #{positional_encoding_forward.1} parent=27 // pred_region
          %221 = dma.done %s214, 1024
        $region32: #{positional_encoding_forward.1} parent=27 // pred_fallthru
          _
        %s222 = sand.u32 %s70, 1
        %s223 = scalar_lea.sflag [#allocation6], %s222
        %s224 = sand.u32 %s70, 1
        %s225 = smul.addr %s224, 32
        %s226 = scalar_lea.vmem [#allocation5], %s225
        // Predicated region
        $region33: #{positional_encoding_forward.1} parent=27 // pred_check
          %p227 = pneg %p83
        $region34: #{positional_encoding_forward.1} parent=27 // pred_check_branch
          %229 = sbr.rel (%p227) target = $region36
        $region35: #{positional_encoding_forward.1} parent=27 // pred_region
          %230 = dma.done %s223, 512
        $region36: #{positional_encoding_forward.1} parent=27 // pred_fallthru
          _
        %s231 = sand.u32 %s44, 1
        %s232 = scalar_lea.sflag [#allocation3], %s231
        %s233 = sand.u32 %s44, 1
        %s234 = smul.addr %s233, 64
        %s235 = scalar_lea.vmem [#allocation2], %s234
        %p236 = pneg %p57
        %p237 = pneg %p54
        %s238 = sand.u32 %s70, 1
        %s239 = scalar_lea.sflag [#allocation6], %s238
        %s240 = sand.u32 %s70, 1
        %s241 = smul.addr %s240, 32
        %s242 = scalar_lea.vmem [#allocation5], %s241
        %p243 = pneg %p83
        %p244 = pneg %p80
        %p245 = pneg %p111
        %p246 = pneg %p108
        %s247 = sand.u32 %s98, 1
        %s248 = scalar_lea.sflag [#allocation4], %s247
        %s249 = sand.u32 %s98, 1
        %s250 = smul.addr %s249, 64
        %s251 = scalar_lea.vmem [#allocation7], %s250
        %s252 = smul.u32 2, %s27
        %s253 = smul.u32 4, %s26
        %s254 = smul.u32 4, %s26
        %s255 = ssub.s32 625, %s254
        %p256 = scmp.lt.s32.totalorder %s255, 4
        %s257 = scalar_select %p256, %s255, 4
        %s258 = smul.u32 128, %s257
        %s259 = smul.u32 2, %s27
        %s260 = smul.u32 4, %s26
        %v261 = vld [vmem:[%s217] sm:$0xff]
        %v262 = vld [vmem:[%s217 + $0x8] sm:$0xff]
        %v263 = vld [vmem:[%s217 + $0x10] sm:$0xff]
        %v264 = vld [vmem:[%s217 + $0x18] sm:$0xff]
        %v265 = vld [vmem:[%s217 + $0x20] sm:$0xff]
        %v266 = vld [vmem:[%s217 + $0x28] sm:$0xff]
        %v267 = vld [vmem:[%s217 + $0x30] sm:$0xff]
        %v268 = vld [vmem:[%s217 + $0x38] sm:$0xff]
        %v269 = vld [vmem:[%s226] sm:$0xff]
        %v270 = vld [vmem:[%s226 + $0x8] sm:$0xff]
        %v271 = vld [vmem:[%s226 + $0x10] sm:$0xff]
        %v272 = vld [vmem:[%s226 + $0x18] sm:$0xff]
        %v273 = vadd.f32 %v261, %v269
        %v274 = vadd.f32 %v262, %v270
        %v275 = vadd.f32 %v263, %v271
        %v276 = vadd.f32 %v264, %v272
        %v277 = vadd.f32 %v265, %v269
        %v278 = vadd.f32 %v266, %v270
        %v279 = vadd.f32 %v267, %v271
        %v280 = vadd.f32 %v268, %v272
        %281 = vst [vmem:[%s251] sm:$0xff] %v273
        %282 = vst [vmem:[%s251 + $0x8] sm:$0xff] %v274
        %283 = vst [vmem:[%s251 + $0x10] sm:$0xff] %v275
        %284 = vst [vmem:[%s251 + $0x18] sm:$0xff] %v276
        %285 = vst [vmem:[%s251 + $0x20] sm:$0xff] %v277
        %286 = vst [vmem:[%s251 + $0x28] sm:$0xff] %v278
        %287 = vst [vmem:[%s251 + $0x30] sm:$0xff] %v279
        %288 = vst [vmem:[%s251 + $0x38] sm:$0xff] %v280
        %s289 = sand.u32 %s98, 1
        %s290 = scalar_lea.sflag [#allocation4], %s289
        %s291 = sand.u32 %s98, 1
        %s292 = smul.addr %s291, 64
        %s293 = scalar_lea.vmem [#allocation7], %s292
        // Predicated region
        $region37: #{positional_encoding_forward.1} parent=27 // pred_check
          %p294 = pneg %p108
        $region38: #{positional_encoding_forward.1} parent=27 // pred_check_branch
          %296 = sbr.rel (%p294) target = $region40
        $region39: #{positional_encoding_forward.1} parent=27 // pred_region
          #allocation11 [shape = 'u32[6]{0}', space=smem, size = 0x18, scoped, tag = 'DMA stride descriptor']
          %s297 = smul.u32 2, %s27
          %s298 = smul.u32 4, %s26
          %s300 = ssub.s32 1024, 1024
          %301 = vsyncadd %s290, %s300
          %s302 = smul.addr %s297, 8
          %s303 = sadd.s32 %s298, %s302
          %s304 = smul.addr %s303, 128
          %s305 = scalar_lea.hbm %s2, %s304
          %s307 = sshll.u32 1, 14
          %s308 = sxor.u32 4294967295, %s307
          %s311 = sshll.u32 7, 18
          %s312 = sxor.u32 4294967295, %s311
          %s313 = sand.u32 0, %s312
          %s315 = sor.u32 %s313, 0
          %s316 = sshll.u32 %s293, 4
          %s317 = int_to_ptr.vmem [resolvable:$true] %s316
          %323 = sst [smem:[#allocation11]] 512
          %s324 = scalar_lea.smem [#allocation11], 1
          %325 = sst [smem:[%s324]] 1024
          %s326 = scalar_lea.smem [#allocation11], 2
          %327 = sst [smem:[%s326]] 4
          %s328 = scalar_lea.smem [#allocation11], 3
          %329 = sst [smem:[%s328]] 128
          %s330 = scalar_lea.smem [#allocation11], 4
          %331 = sst [smem:[%s330]] 128
          %s332 = scalar_lea.smem [#allocation11], 5
          %333 = sst [smem:[%s332]] 8
          %335 = dma.general %s317, 1024, %s305, %s290, 131072, [#allocation11], %s315, 0
        $region40: #{positional_encoding_forward.1} parent=27 // pred_fallthru
          _
      $region28: #{positional_encoding_forward.1} parent=5 // pred_fallthru
        _
      %p336 = scmp.le.s32.totalorder 2, %s17
      // Predicated region
      $region41: #{positional_encoding_forward.1} parent=5 // pred_check
        %p337 = pneg %p336
      $region42: #{positional_encoding_forward.1} parent=5 // pred_check_branch
        %339 = sbr.rel (%p337) target = $region44
      $region43: #{positional_encoding_forward.1} parent=5 // pred_region
        %s340 = ssub.s32 %s17, 2
        // Predicated region
        $region45: #{positional_encoding_forward.1} parent=43 // pred_check
          %p341 = pneg %p114
        $region46: #{positional_encoding_forward.1} parent=43 // pred_check_branch
          %343 = sbr.rel (%p341) target = $region48
        $region47: #{positional_encoding_forward.1} parent=43 // pred_region
          %s344 = sand.u32 %s99, 1
          %s345 = scalar_lea.sflag [#allocation4], %s344
          %s346 = sand.u32 %s99, 1
          %s347 = smul.addr %s346, 64
          %s348 = scalar_lea.vmem [#allocation7], %s347
          %349 = dma.done %s345, 1024
        $region48: #{positional_encoding_forward.1} parent=43 // pred_fallthru
          _
      $region44: #{positional_encoding_forward.1} parent=5 // pred_fallthru
        _
    $region6: #{positional_encoding_forward.1} parent=1 // loop_footer
      %s21 = sadd.s32 1, %s17
    $region7: #{positional_encoding_forward.1} parent=1 // loop_footer_branch
      %16 = sbr.rel target = $region3
    $region8: #{positional_encoding_forward.1} parent=1 // loop_exit
      _
    %350 = vsyncpa [#allocation3], 1
    %s351 = scalar_lea.sflag [#allocation3], 1
    %352 = vsyncpa %s351, 1
    %353 = vsyncpa [#allocation6], 1
    %s354 = scalar_lea.sflag [#allocation6], 1
    %355 = vsyncpa %s354, 1
    %356 = vsyncpa [#allocation4], 1
    %s357 = scalar_lea.sflag [#allocation4], 1
    %358 = vsyncpa %s357, 1

</llo_original>
